<compile_context>
chip_gen: v6e
topology: v6e:2x2x1
jax: 0.10.0
libtpu: 0.0.40
codegen_flags: <defaults>
</compile_context>

<pallas_src>
import math

import jax
import jax.numpy as jnp
from jax.experimental import pallas as pl
from jax.experimental.pallas import tpu as pltpu

_EPS = 1e-8  # PyTorch CosineSimilarity default eps

DEFAULT_LAMBDAS = {
    "p1_z2": 1 / 12, "p1_z6": 1 / 12, "p2_z1": 1 / 12, "p2_z6": 1 / 12,
    "p3_z4": 1 / 12, "p3_z5": 1 / 12, "p4_z3": 1 / 12, "p4_z5": 1 / 12,
    "p5_z3": 1 / 12, "p5_z4": 1 / 12, "p6_z1": 1 / 12, "p6_z2": 1 / 12,
}
assert math.isclose(sum(DEFAULT_LAMBDAS.values()), 1.0)


def _round_up(x, m):
    return ((x + m - 1) // m) * m


def _cdiv(a, b):
    return (a + b - 1) // b


def _native_sublane(dtype):
    # 8 for 4-byte dtypes, 16 for bf16/f16, 32 for int8/fp8 (packed sublanes).
    return max(8, 32 // jnp.dtype(dtype).itemsize)


# ------------------------------------------------------------------- kernel ---
def _make_kernel(pair_idx, lam, tb, true_b, needs_mask):
    """Kernel over one batch tile of every unique tensor.

    refs = (x_0, ..., x_{n_unique-1}, out)
      x_i : (tb, D) VMEM tile of unique tensor i
      out : (1, 8, 128) VMEM block; every element holds this tile's partial
            sum of   sum_j lambda_j * cos_j(row)   over valid rows (lane-dense
            single store; the wrapper reads element [., 0, 0]).
    """

    def kernel(*refs):
        in_refs, out_ref = refs[:-1], refs[-1]

        inv_norm = {}   # tensor index -> (tb, 1) f32 inverse clamped norm (lazy)
        wcos = None     # (tb, 1) accumulator of lambda-weighted cosines

        for j, (ia, ib) in enumerate(pair_idx):
            xa = in_refs[ia][...].astype(jnp.float32)
            xb = in_refs[ib][...].astype(jnp.float32)

            # Lazily compute each unique tensor's inverse norm exactly once.
            # rsqrt(max(||x||^2, eps^2)) == 1 / max(||x||, eps)  (PyTorch clamp).
            if ia not in inv_norm:
                nsq_a = jnp.sum(xa * xa, axis=-1, keepdims=True)
                inv_norm[ia] = jax.lax.rsqrt(jnp.maximum(nsq_a, _EPS * _EPS))
            if ib not in inv_norm:
                nsq_b = jnp.sum(xb * xb, axis=-1, keepdims=True)
                inv_norm[ib] = jax.lax.rsqrt(jnp.maximum(nsq_b, _EPS * _EPS))

            dot = jnp.sum(xa * xb, axis=-1, keepdims=True)            # (tb, 1)
            contrib = (lam[j] * dot) * (inv_norm[ia] * inv_norm[ib])  # (tb, 1)
            wcos = contrib if wcos is None else wcos + contrib

        if needs_mask:
            # Mask rows beyond the true batch size (partial last tile); the
            # select also neutralizes any NaN/Inf arising from garbage rows.
            row = (pl.program_id(0) * tb
                   + jax.lax.broadcasted_iota(jnp.int32, (tb, 1), 0))
            wcos = jnp.where(row < true_b, wcos, 0.0)

        total = jnp.sum(wcos)                                         # scalar
        # One lane-dense store of the whole (1, 8, 128) block (scalar splat).
        out_ref[...] = jnp.broadcast_to(total, out_ref.shape).astype(jnp.float32)

    return kernel


# ------------------------------------------------------------------ wrapper ---
def tripod_loss(inputs, lambdas=None, stopgrad=True, max_batch_tile=1024):
    """inputs: dict with keys p1..p6, z1..z6, each of shape (B, D)."""
    if lambdas is None:
        lambdas = DEFAULT_LAMBDAS
    assert math.isclose(sum(lambdas.values()), 1.0), \
        "Sum of the lambdas for the TriPodLoss needs to be 1."

    if stopgrad:
        inputs = {
            k: (jax.lax.stop_gradient(v) if k.startswith("z") else v)
            for k, v in inputs.items()
        }

    # Unique tensors actually referenced by the lambdas + static pair table.
    pair_keys = list(lambdas.keys())
    names = []
    for k in pair_keys:
        pred, _, proj = k.partition("_")
        for n in (pred, proj):
            if n not in names:
                names.append(n)
    pair_idx = tuple(
        (names.index(k.partition("_")[0]), names.index(k.partition("_")[2]))
        for k in pair_keys
    )
    lam = [float(lambdas[k]) for k in pair_keys]
    n_unique = len(names)

    tensors = [inputs[n] for n in names]
    B, D = tensors[0].shape
    for t in tensors:
        assert t.shape == (B, D), "all projector/predictor tensors must be (B, D)"
    dtype = tensors[0].dtype
    itemsize = jnp.dtype(dtype).itemsize
    sub = _native_sublane(dtype)

    # --- generation-aware VMEM budget -------------------------------------
    try:
        info = pltpu.get_tpu_info()
        vmem_cap = int(getattr(info, "vmem_capacity_bytes", 64 << 20))
    except Exception:
        vmem_cap = 64 << 20                      # conservative (v7x-safe) fallback
    is_small_vmem_part = vmem_cap <= (64 << 20)  # v7x-class: 64 MiB per TensorCore
    if is_small_vmem_part:
        input_budget = 24 << 20                  # double-buffered inputs
        vmem_limit = min(48 << 20, (vmem_cap * 3) // 4)
    else:                                        # v5e / v6e: 128 MiB physical
        input_budget = 80 << 20
        vmem_limit = 112 << 20

    # --- batch tile: n_unique tensors x 2 pipeline buffers x (tb, D) -------
    bytes_per_row = n_unique * D * itemsize * 2
    tb = max(sub, (input_budget // max(bytes_per_row, 1)) // sub * sub)
    tb = min(tb, _round_up(max_batch_tile, sub))
    tb = min(tb, _round_up(B, sub))

    # Keep >= 2 grid steps when the batch allows it: mandatory on v7x-class
    # parts (two TensorCores split the "parallel" axis); on 128-MiB parts only
    # when tiles stay >= 512 rows so DMA efficiency is preserved.
    if B > sub and _cdiv(B, tb) < 2:
        tb_half = _round_up(_cdiv(B, 2), sub)
        if is_small_vmem_part or tb_half >= 512:
            tb = tb_half

    n_btiles = _cdiv(B, tb)
    needs_mask = (n_btiles * tb) != B
    kernel = _make_kernel(pair_idx, lam, tb, B, needs_mask)

    partials = pl.pallas_call(
        kernel,
        out_shape=jax.ShapeDtypeStruct((n_btiles, 8, 128), jnp.float32),
        grid_spec=pltpu.PrefetchScalarGridSpec(
            num_scalar_prefetch=0,
            grid=(n_btiles,),
            in_specs=[
                pl.BlockSpec((tb, D), lambda b: (b, 0)) for _ in range(n_unique)
            ],
            out_specs=pl.BlockSpec((1, 8, 128), lambda b: (b, 0, 0)),
        ),
        compiler_params=pltpu.CompilerParams(
            dimension_semantics=("parallel",),
            vmem_limit_bytes=int(vmem_limit),
        ),
    )(*tensors)

    # Tiny epilogue in plain JAX: lambdas are already applied in-kernel, so
    # loss = -(1/B) * sum over tiles of the weighted per-row cosine sums.
    per_tile = partials[:, 0, 0]                         # (n_btiles,)
    return -jnp.sum(per_tile) / jnp.float32(B)


# ---------------------------------------------------------------- reference ---
def tripod_loss_ref(inputs, lambdas=None):
    """Pure-JAX reference with PyTorch nn.CosineSimilarity eps semantics
    (each norm clamped separately)."""
    if lambdas is None:
        lambdas = DEFAULT_LAMBDAS
    loss = 0.0
    for k, v in lambdas.items():
        pred, _, proj = k.partition("_")
        x1 = inputs[pred].astype(jnp.float32)
        x2 = inputs[proj].astype(jnp.float32)
        dots = jnp.sum(x1 * x2, axis=1)
        n1 = jnp.maximum(jnp.linalg.norm(x1, axis=1), _EPS)
        n2 = jnp.maximum(jnp.linalg.norm(x2, axis=1), _EPS)
        cos = dots / (n1 * n2)
        loss += v * (-jnp.mean(cos))
    return loss


# --------------------------------------------------------------------- main ---
if __name__ == "__main__":
    names = [f"p{i}" for i in range(1, 7)] + [f"z{i}" for i in range(1, 7)]

    # 1) single-tile path (B divisible by the tile, no masking)
    B, D = 8, 32
    keys = jax.random.split(jax.random.PRNGKey(0), len(names))
    inputs = {
        n: jax.random.normal(k, (B, D), dtype=jnp.float32)
        for n, k in zip(names, keys)
    }
    loss = jax.block_until_ready(tripod_loss(inputs))
    ref = tripod_loss_ref(inputs)
    assert jnp.allclose(loss, ref, atol=1e-5, rtol=1e-4), (loss, ref)

    # 2) multi-tile + in-kernel tail-row masking (3 tiles of 8 rows, 4 masked)
    B2 = 20
    keys2 = jax.random.split(jax.random.PRNGKey(0), len(names))
    inputs2 = {
        n: jax.random.normal(k, (B2, D), dtype=jnp.float32)
        for n, k in zip(names, keys2)
    }
    loss2 = jax.block_until_ready(tripod_loss(inputs2, max_batch_tile=8))
    ref2 = tripod_loss_ref(inputs2)
    assert jnp.allclose(loss2, ref2, atol=1e-5, rtol=1e-4), (loss2, ref2)

    # 3) bf16 inputs: native sublane multiple of 16, half the HBM bytes,
    #    f32 math in-kernel (2 tiles of 16 rows, 12 masked rows in the last).
    inputs3 = {n: v.astype(jnp.bfloat16) for n, v in inputs2.items()}
    loss3 = jax.block_until_ready(tripod_loss(inputs3, max_batch_tile=16))
    ref3 = tripod_loss_ref(inputs3)
    assert jnp.allclose(loss3, ref3, atol=1e-4, rtol=1e-3), (loss3, ref3)

    print("KERNEL_OK")
</pallas_src>

<mosaic_0001>
module attributes {stable_mosaic.version = 11 : i64} {
  func.func @kernel(%arg0: i32, %arg1: memref<8x32xf32, #tpu.memory_space<vmem>>, %arg2: memref<8x32xf32, #tpu.memory_space<vmem>>, %arg3: memref<8x32xf32, #tpu.memory_space<vmem>>, %arg4: memref<8x32xf32, #tpu.memory_space<vmem>>, %arg5: memref<8x32xf32, #tpu.memory_space<vmem>>, %arg6: memref<8x32xf32, #tpu.memory_space<vmem>>, %arg7: memref<8x32xf32, #tpu.memory_space<vmem>>, %arg8: memref<8x32xf32, #tpu.memory_space<vmem>>, %arg9: memref<8x32xf32, #tpu.memory_space<vmem>>, %arg10: memref<8x32xf32, #tpu.memory_space<vmem>>, %arg11: memref<8x32xf32, #tpu.memory_space<vmem>>, %arg12: memref<8x32xf32, #tpu.memory_space<vmem>>, %arg13: memref<1x8x128xf32, #tpu.memory_space<vmem>>) attributes {dimension_semantics = [#tpu.dimension_semantics<parallel>], iteration_bounds = array<i64: 1>, scalar_prefetch = 0 : i64, scratch_operands = 0 : i64, tpu.core_type = #tpu.core_type<tc>, window_params = [{transform_indices = @transform_0, window_bounds = array<i64: 8, 32>}, {transform_indices = @transform_1, window_bounds = array<i64: 8, 32>}, {transform_indices = @transform_2, window_bounds = array<i64: 8, 32>}, {transform_indices = @transform_3, window_bounds = array<i64: 8, 32>}, {transform_indices = @transform_4, window_bounds = array<i64: 8, 32>}, {transform_indices = @transform_5, window_bounds = array<i64: 8, 32>}, {transform_indices = @transform_6, window_bounds = array<i64: 8, 32>}, {transform_indices = @transform_7, window_bounds = array<i64: 8, 32>}, {transform_indices = @transform_8, window_bounds = array<i64: 8, 32>}, {transform_indices = @transform_9, window_bounds = array<i64: 8, 32>}, {transform_indices = @transform_10, window_bounds = array<i64: 8, 32>}, {transform_indices = @transform_11, window_bounds = array<i64: 8, 32>}, {transform_indices = @transform_12, window_bounds = array<i64: 1, 8, 128>}]} {
    %c0 = arith.constant 0 : index
    %c0_0 = arith.constant 0 : index
    %0 = vector.load %arg1[%c0, %c0_0] : memref<8x32xf32, #tpu.memory_space<vmem>>, vector<8x32xf32>
    %c0_1 = arith.constant 0 : index
    %c0_2 = arith.constant 0 : index
    %1 = vector.load %arg2[%c0_1, %c0_2] : memref<8x32xf32, #tpu.memory_space<vmem>>, vector<8x32xf32>
    %2 = arith.mulf %0, %0 : vector<8x32xf32>
    %cst = arith.constant dense<0.000000e+00> : vector<8xf32>
    %3 = vector.multi_reduction <add>, %2, %cst [1] : vector<8x32xf32> to vector<8xf32>
    %4 = vector.shape_cast %3 : vector<8xf32> to vector<8x1xf32>
    %cst_3 = arith.constant 1.000000e-16 : f32
    %5 = vector.broadcast %cst_3 : f32 to vector<8x1xf32>
    %6 = arith.maximumf %4, %5 : vector<8x1xf32>
    %7 = math.rsqrt %6 : vector<8x1xf32>
    %8 = arith.mulf %1, %1 : vector<8x32xf32>
    %cst_4 = arith.constant dense<0.000000e+00> : vector<8xf32>
    %9 = vector.multi_reduction <add>, %8, %cst_4 [1] : vector<8x32xf32> to vector<8xf32>
    %10 = vector.shape_cast %9 : vector<8xf32> to vector<8x1xf32>
    %cst_5 = arith.constant 1.000000e-16 : f32
    %11 = vector.broadcast %cst_5 : f32 to vector<8x1xf32>
    %12 = arith.maximumf %10, %11 : vector<8x1xf32>
    %13 = math.rsqrt %12 : vector<8x1xf32>
    %14 = arith.mulf %0, %1 : vector<8x32xf32>
    %cst_6 = arith.constant dense<0.000000e+00> : vector<8xf32>
    %15 = vector.multi_reduction <add>, %14, %cst_6 [1] : vector<8x32xf32> to vector<8xf32>
    %16 = vector.shape_cast %15 : vector<8xf32> to vector<8x1xf32>
    %cst_7 = arith.constant 0.0833333358 : f32
    %17 = vector.broadcast %cst_7 : f32 to vector<8x1xf32>
    %18 = arith.mulf %17, %16 : vector<8x1xf32>
    %19 = arith.mulf %7, %13 : vector<8x1xf32>
    %20 = arith.mulf %18, %19 : vector<8x1xf32>
    %c0_8 = arith.constant 0 : index
    %c0_9 = arith.constant 0 : index
    %21 = vector.load %arg1[%c0_8, %c0_9] : memref<8x32xf32, #tpu.memory_space<vmem>>, vector<8x32xf32>
    %c0_10 = arith.constant 0 : index
    %c0_11 = arith.constant 0 : index
    %22 = vector.load %arg3[%c0_10, %c0_11] : memref<8x32xf32, #tpu.memory_space<vmem>>, vector<8x32xf32>
    %23 = arith.mulf %22, %22 : vector<8x32xf32>
    %cst_12 = arith.constant dense<0.000000e+00> : vector<8xf32>
    %24 = vector.multi_reduction <add>, %23, %cst_12 [1] : vector<8x32xf32> to vector<8xf32>
    %25 = vector.shape_cast %24 : vector<8xf32> to vector<8x1xf32>
    %cst_13 = arith.constant 1.000000e-16 : f32
    %26 = vector.broadcast %cst_13 : f32 to vector<8x1xf32>
    %27 = arith.maximumf %25, %26 : vector<8x1xf32>
    %28 = math.rsqrt %27 : vector<8x1xf32>
    %29 = arith.mulf %21, %22 : vector<8x32xf32>
    %cst_14 = arith.constant dense<0.000000e+00> : vector<8xf32>
    %30 = vector.multi_reduction <add>, %29, %cst_14 [1] : vector<8x32xf32> to vector<8xf32>
    %31 = vector.shape_cast %30 : vector<8xf32> to vector<8x1xf32>
    %cst_15 = arith.constant 0.0833333358 : f32
    %32 = vector.broadcast %cst_15 : f32 to vector<8x1xf32>
    %33 = arith.mulf %32, %31 : vector<8x1xf32>
    %34 = arith.mulf %7, %28 : vector<8x1xf32>
    %35 = arith.mulf %33, %34 : vector<8x1xf32>
    %36 = arith.addf %20, %35 : vector<8x1xf32>
    %c0_16 = arith.constant 0 : index
    %c0_17 = arith.constant 0 : index
    %37 = vector.load %arg4[%c0_16, %c0_17] : memref<8x32xf32, #tpu.memory_space<vmem>>, vector<8x32xf32>
    %c0_18 = arith.constant 0 : index
    %c0_19 = arith.constant 0 : index
    %38 = vector.load %arg5[%c0_18, %c0_19] : memref<8x32xf32, #tpu.memory_space<vmem>>, vector<8x32xf32>
    %39 = arith.mulf %37, %37 : vector<8x32xf32>
    %cst_20 = arith.constant dense<0.000000e+00> : vector<8xf32>
    %40 = vector.multi_reduction <add>, %39, %cst_20 [1] : vector<8x32xf32> to vector<8xf32>
    %41 = vector.shape_cast %40 : vector<8xf32> to vector<8x1xf32>
    %cst_21 = arith.constant 1.000000e-16 : f32
    %42 = vector.broadcast %cst_21 : f32 to vector<8x1xf32>
    %43 = arith.maximumf %41, %42 : vector<8x1xf32>
    %44 = math.rsqrt %43 : vector<8x1xf32>
    %45 = arith.mulf %38, %38 : vector<8x32xf32>
    %cst_22 = arith.constant dense<0.000000e+00> : vector<8xf32>
    %46 = vector.multi_reduction <add>, %45, %cst_22 [1] : vector<8x32xf32> to vector<8xf32>
    %47 = vector.shape_cast %46 : vector<8xf32> to vector<8x1xf32>
    %cst_23 = arith.constant 1.000000e-16 : f32
    %48 = vector.broadcast %cst_23 : f32 to vector<8x1xf32>
    %49 = arith.maximumf %47, %48 : vector<8x1xf32>
    %50 = math.rsqrt %49 : vector<8x1xf32>
    %51 = arith.mulf %37, %38 : vector<8x32xf32>
    %cst_24 = arith.constant dense<0.000000e+00> : vector<8xf32>
    %52 = vector.multi_reduction <add>, %51, %cst_24 [1] : vector<8x32xf32> to vector<8xf32>
    %53 = vector.shape_cast %52 : vector<8xf32> to vector<8x1xf32>
    %cst_25 = arith.constant 0.0833333358 : f32
    %54 = vector.broadcast %cst_25 : f32 to vector<8x1xf32>
    %55 = arith.mulf %54, %53 : vector<8x1xf32>
    %56 = arith.mulf %44, %50 : vector<8x1xf32>
    %57 = arith.mulf %55, %56 : vector<8x1xf32>
    %58 = arith.addf %36, %57 : vector<8x1xf32>
    %c0_26 = arith.constant 0 : index
    %c0_27 = arith.constant 0 : index
    %59 = vector.load %arg4[%c0_26, %c0_27] : memref<8x32xf32, #tpu.memory_space<vmem>>, vector<8x32xf32>
    %c0_28 = arith.constant 0 : index
    %c0_29 = arith.constant 0 : index
    %60 = vector.load %arg3[%c0_28, %c0_29] : memref<8x32xf32, #tpu.memory_space<vmem>>, vector<8x32xf32>
    %61 = arith.mulf %59, %60 : vector<8x32xf32>
    %cst_30 = arith.constant dense<0.000000e+00> : vector<8xf32>
    %62 = vector.multi_reduction <add>, %61, %cst_30 [1] : vector<8x32xf32> to vector<8xf32>
    %63 = vector.shape_cast %62 : vector<8xf32> to vector<8x1xf32>
    %cst_31 = arith.constant 0.0833333358 : f32
    %64 = vector.broadcast %cst_31 : f32 to vector<8x1xf32>
    %65 = arith.mulf %64, %63 : vector<8x1xf32>
    %66 = arith.mulf %44, %28 : vector<8x1xf32>
    %67 = arith.mulf %65, %66 : vector<8x1xf32>
    %68 = arith.addf %58, %67 : vector<8x1xf32>
    %c0_32 = arith.constant 0 : index
    %c0_33 = arith.constant 0 : index
    %69 = vector.load %arg6[%c0_32, %c0_33] : memref<8x32xf32, #tpu.memory_space<vmem>>, vector<8x32xf32>
    %c0_34 = arith.constant 0 : index
    %c0_35 = arith.constant 0 : index
    %70 = vector.load %arg7[%c0_34, %c0_35] : memref<8x32xf32, #tpu.memory_space<vmem>>, vector<8x32xf32>
    %71 = arith.mulf %69, %69 : vector<8x32xf32>
    %cst_36 = arith.constant dense<0.000000e+00> : vector<8xf32>
    %72 = vector.multi_reduction <add>, %71, %cst_36 [1] : vector<8x32xf32> to vector<8xf32>
    %73 = vector.shape_cast %72 : vector<8xf32> to vector<8x1xf32>
    %cst_37 = arith.constant 1.000000e-16 : f32
    %74 = vector.broadcast %cst_37 : f32 to vector<8x1xf32>
    %75 = arith.maximumf %73, %74 : vector<8x1xf32>
    %76 = math.rsqrt %75 : vector<8x1xf32>
    %77 = arith.mulf %70, %70 : vector<8x32xf32>
    %cst_38 = arith.constant dense<0.000000e+00> : vector<8xf32>
    %78 = vector.multi_reduction <add>, %77, %cst_38 [1] : vector<8x32xf32> to vector<8xf32>
    %79 = vector.shape_cast %78 : vector<8xf32> to vector<8x1xf32>
    %cst_39 = arith.constant 1.000000e-16 : f32
    %80 = vector.broadcast %cst_39 : f32 to vector<8x1xf32>
    %81 = arith.maximumf %79, %80 : vector<8x1xf32>
    %82 = math.rsqrt %81 : vector<8x1xf32>
    %83 = arith.mulf %69, %70 : vector<8x32xf32>
    %cst_40 = arith.constant dense<0.000000e+00> : vector<8xf32>
    %84 = vector.multi_reduction <add>, %83, %cst_40 [1] : vector<8x32xf32> to vector<8xf32>
    %85 = vector.shape_cast %84 : vector<8xf32> to vector<8x1xf32>
    %cst_41 = arith.constant 0.0833333358 : f32
    %86 = vector.broadcast %cst_41 : f32 to vector<8x1xf32>
    %87 = arith.mulf %86, %85 : vector<8x1xf32>
    %88 = arith.mulf %76, %82 : vector<8x1xf32>
    %89 = arith.mulf %87, %88 : vector<8x1xf32>
    %90 = arith.addf %68, %89 : vector<8x1xf32>
    %c0_42 = arith.constant 0 : index
    %c0_43 = arith.constant 0 : index
    %91 = vector.load %arg6[%c0_42, %c0_43] : memref<8x32xf32, #tpu.memory_space<vmem>>, vector<8x32xf32>
    %c0_44 = arith.constant 0 : index
    %c0_45 = arith.constant 0 : index
    %92 = vector.load %arg8[%c0_44, %c0_45] : memref<8x32xf32, #tpu.memory_space<vmem>>, vector<8x32xf32>
    %93 = arith.mulf %92, %92 : vector<8x32xf32>
    %cst_46 = arith.constant dense<0.000000e+00> : vector<8xf32>
    %94 = vector.multi_reduction <add>, %93, %cst_46 [1] : vector<8x32xf32> to vector<8xf32>
    %95 = vector.shape_cast %94 : vector<8xf32> to vector<8x1xf32>
    %cst_47 = arith.constant 1.000000e-16 : f32
    %96 = vector.broadcast %cst_47 : f32 to vector<8x1xf32>
    %97 = arith.maximumf %95, %96 : vector<8x1xf32>
    %98 = math.rsqrt %97 : vector<8x1xf32>
    %99 = arith.mulf %91, %92 : vector<8x32xf32>
    %cst_48 = arith.constant dense<0.000000e+00> : vector<8xf32>
    %100 = vector.multi_reduction <add>, %99, %cst_48 [1] : vector<8x32xf32> to vector<8xf32>
    %101 = vector.shape_cast %100 : vector<8xf32> to vector<8x1xf32>
    %cst_49 = arith.constant 0.0833333358 : f32
    %102 = vector.broadcast %cst_49 : f32 to vector<8x1xf32>
    %103 = arith.mulf %102, %101 : vector<8x1xf32>
    %104 = arith.mulf %76, %98 : vector<8x1xf32>
    %105 = arith.mulf %103, %104 : vector<8x1xf32>
    %106 = arith.addf %90, %105 : vector<8x1xf32>
    %c0_50 = arith.constant 0 : index
    %c0_51 = arith.constant 0 : index
    %107 = vector.load %arg9[%c0_50, %c0_51] : memref<8x32xf32, #tpu.memory_space<vmem>>, vector<8x32xf32>
    %c0_52 = arith.constant 0 : index
    %c0_53 = arith.constant 0 : index
    %108 = vector.load %arg10[%c0_52, %c0_53] : memref<8x32xf32, #tpu.memory_space<vmem>>, vector<8x32xf32>
    %109 = arith.mulf %107, %107 : vector<8x32xf32>
    %cst_54 = arith.constant dense<0.000000e+00> : vector<8xf32>
    %110 = vector.multi_reduction <add>, %109, %cst_54 [1] : vector<8x32xf32> to vector<8xf32>
    %111 = vector.shape_cast %110 : vector<8xf32> to vector<8x1xf32>
    %cst_55 = arith.constant 1.000000e-16 : f32
    %112 = vector.broadcast %cst_55 : f32 to vector<8x1xf32>
    %113 = arith.maximumf %111, %112 : vector<8x1xf32>
    %114 = math.rsqrt %113 : vector<8x1xf32>
    %115 = arith.mulf %108, %108 : vector<8x32xf32>
    %cst_56 = arith.constant dense<0.000000e+00> : vector<8xf32>
    %116 = vector.multi_reduction <add>, %115, %cst_56 [1] : vector<8x32xf32> to vector<8xf32>
    %117 = vector.shape_cast %116 : vector<8xf32> to vector<8x1xf32>
    %cst_57 = arith.constant 1.000000e-16 : f32
    %118 = vector.broadcast %cst_57 : f32 to vector<8x1xf32>
    %119 = arith.maximumf %117, %118 : vector<8x1xf32>
    %120 = math.rsqrt %119 : vector<8x1xf32>
    %121 = arith.mulf %107, %108 : vector<8x32xf32>
    %cst_58 = arith.constant dense<0.000000e+00> : vector<8xf32>
    %122 = vector.multi_reduction <add>, %121, %cst_58 [1] : vector<8x32xf32> to vector<8xf32>
    %123 = vector.shape_cast %122 : vector<8xf32> to vector<8x1xf32>
    %cst_59 = arith.constant 0.0833333358 : f32
    %124 = vector.broadcast %cst_59 : f32 to vector<8x1xf32>
    %125 = arith.mulf %124, %123 : vector<8x1xf32>
    %126 = arith.mulf %114, %120 : vector<8x1xf32>
    %127 = arith.mulf %125, %126 : vector<8x1xf32>
    %128 = arith.addf %106, %127 : vector<8x1xf32>
    %c0_60 = arith.constant 0 : index
    %c0_61 = arith.constant 0 : index
    %129 = vector.load %arg9[%c0_60, %c0_61] : memref<8x32xf32, #tpu.memory_space<vmem>>, vector<8x32xf32>
    %c0_62 = arith.constant 0 : index
    %c0_63 = arith.constant 0 : index
    %130 = vector.load %arg8[%c0_62, %c0_63] : memref<8x32xf32, #tpu.memory_space<vmem>>, vector<8x32xf32>
    %131 = arith.mulf %129, %130 : vector<8x32xf32>
    %cst_64 = arith.constant dense<0.000000e+00> : vector<8xf32>
    %132 = vector.multi_reduction <add>, %131, %cst_64 [1] : vector<8x32xf32> to vector<8xf32>
    %133 = vector.shape_cast %132 : vector<8xf32> to vector<8x1xf32>
    %cst_65 = arith.constant 0.0833333358 : f32
    %134 = vector.broadcast %cst_65 : f32 to vector<8x1xf32>
    %135 = arith.mulf %134, %133 : vector<8x1xf32>
    %136 = arith.mulf %114, %98 : vector<8x1xf32>
    %137 = arith.mulf %135, %136 : vector<8x1xf32>
    %138 = arith.addf %128, %137 : vector<8x1xf32>
    %c0_66 = arith.constant 0 : index
    %c0_67 = arith.constant 0 : index
    %139 = vector.load %arg11[%c0_66, %c0_67] : memref<8x32xf32, #tpu.memory_space<vmem>>, vector<8x32xf32>
    %c0_68 = arith.constant 0 : index
    %c0_69 = arith.constant 0 : index
    %140 = vector.load %arg10[%c0_68, %c0_69] : memref<8x32xf32, #tpu.memory_space<vmem>>, vector<8x32xf32>
    %141 = arith.mulf %139, %139 : vector<8x32xf32>
    %cst_70 = arith.constant dense<0.000000e+00> : vector<8xf32>
    %142 = vector.multi_reduction <add>, %141, %cst_70 [1] : vector<8x32xf32> to vector<8xf32>
    %143 = vector.shape_cast %142 : vector<8xf32> to vector<8x1xf32>
    %cst_71 = arith.constant 1.000000e-16 : f32
    %144 = vector.broadcast %cst_71 : f32 to vector<8x1xf32>
    %145 = arith.maximumf %143, %144 : vector<8x1xf32>
    %146 = math.rsqrt %145 : vector<8x1xf32>
    %147 = arith.mulf %139, %140 : vector<8x32xf32>
    %cst_72 = arith.constant dense<0.000000e+00> : vector<8xf32>
    %148 = vector.multi_reduction <add>, %147, %cst_72 [1] : vector<8x32xf32> to vector<8xf32>
    %149 = vector.shape_cast %148 : vector<8xf32> to vector<8x1xf32>
    %cst_73 = arith.constant 0.0833333358 : f32
    %150 = vector.broadcast %cst_73 : f32 to vector<8x1xf32>
    %151 = arith.mulf %150, %149 : vector<8x1xf32>
    %152 = arith.mulf %146, %120 : vector<8x1xf32>
    %153 = arith.mulf %151, %152 : vector<8x1xf32>
    %154 = arith.addf %138, %153 : vector<8x1xf32>
    %c0_74 = arith.constant 0 : index
    %c0_75 = arith.constant 0 : index
    %155 = vector.load %arg11[%c0_74, %c0_75] : memref<8x32xf32, #tpu.memory_space<vmem>>, vector<8x32xf32>
    %c0_76 = arith.constant 0 : index
    %c0_77 = arith.constant 0 : index
    %156 = vector.load %arg7[%c0_76, %c0_77] : memref<8x32xf32, #tpu.memory_space<vmem>>, vector<8x32xf32>
    %157 = arith.mulf %155, %156 : vector<8x32xf32>
    %cst_78 = arith.constant dense<0.000000e+00> : vector<8xf32>
    %158 = vector.multi_reduction <add>, %157, %cst_78 [1] : vector<8x32xf32> to vector<8xf32>
    %159 = vector.shape_cast %158 : vector<8xf32> to vector<8x1xf32>
    %cst_79 = arith.constant 0.0833333358 : f32
    %160 = vector.broadcast %cst_79 : f32 to vector<8x1xf32>
    %161 = arith.mulf %160, %159 : vector<8x1xf32>
    %162 = arith.mulf %146, %82 : vector<8x1xf32>
    %163 = arith.mulf %161, %162 : vector<8x1xf32>
    %164 = arith.addf %154, %163 : vector<8x1xf32>
    %c0_80 = arith.constant 0 : index
    %c0_81 = arith.constant 0 : index
    %165 = vector.load %arg12[%c0_80, %c0_81] : memref<8x32xf32, #tpu.memory_space<vmem>>, vector<8x32xf32>
    %c0_82 = arith.constant 0 : index
    %c0_83 = arith.constant 0 : index
    %166 = vector.load %arg5[%c0_82, %c0_83] : memref<8x32xf32, #tpu.memory_space<vmem>>, vector<8x32xf32>
    %167 = arith.mulf %165, %165 : vector<8x32xf32>
    %cst_84 = arith.constant dense<0.000000e+00> : vector<8xf32>
    %168 = vector.multi_reduction <add>, %167, %cst_84 [1] : vector<8x32xf32> to vector<8xf32>
    %169 = vector.shape_cast %168 : vector<8xf32> to vector<8x1xf32>
    %cst_85 = arith.constant 1.000000e-16 : f32
    %170 = vector.broadcast %cst_85 : f32 to vector<8x1xf32>
    %171 = arith.maximumf %169, %170 : vector<8x1xf32>
    %172 = math.rsqrt %171 : vector<8x1xf32>
    %173 = arith.mulf %165, %166 : vector<8x32xf32>
    %cst_86 = arith.constant dense<0.000000e+00> : vector<8xf32>
    %174 = vector.multi_reduction <add>, %173, %cst_86 [1] : vector<8x32xf32> to vector<8xf32>
    %175 = vector.shape_cast %174 : vector<8xf32> to vector<8x1xf32>
    %cst_87 = arith.constant 0.0833333358 : f32
    %176 = vector.broadcast %cst_87 : f32 to vector<8x1xf32>
    %177 = arith.mulf %176, %175 : vector<8x1xf32>
    %178 = arith.mulf %172, %50 : vector<8x1xf32>
    %179 = arith.mulf %177, %178 : vector<8x1xf32>
    %180 = arith.addf %164, %179 : vector<8x1xf32>
    %c0_88 = arith.constant 0 : index
    %c0_89 = arith.constant 0 : index
    %181 = vector.load %arg12[%c0_88, %c0_89] : memref<8x32xf32, #tpu.memory_space<vmem>>, vector<8x32xf32>
    %c0_90 = arith.constant 0 : index
    %c0_91 = arith.constant 0 : index
    %182 = vector.load %arg2[%c0_90, %c0_91] : memref<8x32xf32, #tpu.memory_space<vmem>>, vector<8x32xf32>
    %183 = arith.mulf %181, %182 : vector<8x32xf32>
    %cst_92 = arith.constant dense<0.000000e+00> : vector<8xf32>
    %184 = vector.multi_reduction <add>, %183, %cst_92 [1] : vector<8x32xf32> to vector<8xf32>
    %185 = vector.shape_cast %184 : vector<8xf32> to vector<8x1xf32>
    %cst_93 = arith.constant 0.0833333358 : f32
    %186 = vector.broadcast %cst_93 : f32 to vector<8x1xf32>
    %187 = arith.mulf %186, %185 : vector<8x1xf32>
    %188 = arith.mulf %172, %13 : vector<8x1xf32>
    %189 = arith.mulf %187, %188 : vector<8x1xf32>
    %190 = arith.addf %180, %189 : vector<8x1xf32>
    %191 = vector.shape_cast %190 : vector<8x1xf32> to vector<1x8x1xf32>
    %cst_94 = arith.constant dense<0.000000e+00> : vector<1xf32>
    %192 = vector.multi_reduction <add>, %191, %cst_94 [1, 2] : vector<1x8x1xf32> to vector<1xf32>
    %193 = vector.shape_cast %192 : vector<1xf32> to vector<1x1x1xf32>
    %194 = vector.extract %193[0, 0, 0] : f32 from vector<1x1x1xf32>
    %195 = vector.broadcast %194 : f32 to vector<1x8x128xf32>
    %c0_95 = arith.constant 0 : index
    %c0_96 = arith.constant 0 : index
    %c0_97 = arith.constant 0 : index
    %196 = vector.load %arg13[%c0_95, %c0_96, %c0_97] : memref<1x8x128xf32, #tpu.memory_space<vmem>>, vector<1x8x128xf32>
    tpu.vector_store %arg13[%c0_95, %c0_96, %c0_97], %195 {strides = array<i32>} : memref<1x8x128xf32, #tpu.memory_space<vmem>>, vector<1x8x128xf32>,
    return
  }
  func.func @transform_0(%arg0: i32) -> (i32, i32) {
    %c0_i32 = arith.constant 0 : i32
    %c0_i32_0 = arith.constant 0 : i32
    return %arg0, %c0_i32 : i32, i32
  }
  func.func @transform_1(%arg0: i32) -> (i32, i32) {
    %c0_i32 = arith.constant 0 : i32
    %c0_i32_0 = arith.constant 0 : i32
    return %arg0, %c0_i32 : i32, i32
  }
  func.func @transform_2(%arg0: i32) -> (i32, i32) {
    %c0_i32 = arith.constant 0 : i32
    %c0_i32_0 = arith.constant 0 : i32
    return %arg0, %c0_i32 : i32, i32
  }
  func.func @transform_3(%arg0: i32) -> (i32, i32) {
    %c0_i32 = arith.constant 0 : i32
    %c0_i32_0 = arith.constant 0 : i32
    return %arg0, %c0_i32 : i32, i32
  }
  func.func @transform_4(%arg0: i32) -> (i32, i32) {
    %c0_i32 = arith.constant 0 : i32
    %c0_i32_0 = arith.constant 0 : i32
    return %arg0, %c0_i32 : i32, i32
  }
  func.func @transform_5(%arg0: i32) -> (i32, i32) {
    %c0_i32 = arith.constant 0 : i32
    %c0_i32_0 = arith.constant 0 : i32
    return %arg0, %c0_i32 : i32, i32
  }
  func.func @transform_6(%arg0: i32) -> (i32, i32) {
    %c0_i32 = arith.constant 0 : i32
    %c0_i32_0 = arith.constant 0 : i32
    return %arg0, %c0_i32 : i32, i32
  }
  func.func @transform_7(%arg0: i32) -> (i32, i32) {
    %c0_i32 = arith.constant 0 : i32
    %c0_i32_0 = arith.constant 0 : i32
    return %arg0, %c0_i32 : i32, i32
  }
  func.func @transform_8(%arg0: i32) -> (i32, i32) {
    %c0_i32 = arith.constant 0 : i32
    %c0_i32_0 = arith.constant 0 : i32
    return %arg0, %c0_i32 : i32, i32
  }
  func.func @transform_9(%arg0: i32) -> (i32, i32) {
    %c0_i32 = arith.constant 0 : i32
    %c0_i32_0 = arith.constant 0 : i32
    return %arg0, %c0_i32 : i32, i32
  }
  func.func @transform_10(%arg0: i32) -> (i32, i32) {
    %c0_i32 = arith.constant 0 : i32
    %c0_i32_0 = arith.constant 0 : i32
    return %arg0, %c0_i32 : i32, i32
  }
  func.func @transform_11(%arg0: i32) -> (i32, i32) {
    %c0_i32 = arith.constant 0 : i32
    %c0_i32_0 = arith.constant 0 : i32
    return %arg0, %c0_i32 : i32, i32
  }
  func.func @transform_12(%arg0: i32) -> (i32, i32, i32) {
    %c0_i32 = arith.constant 0 : i32
    %c0_i32_0 = arith.constant 0 : i32
    %c0_i32_1 = arith.constant 0 : i32
    return %arg0, %c0_i32, %c0_i32_0 : i32, i32, i32
  }
}

</mosaic_0001>

<llo_original>
// kernel: tpu_custom_call.1
$region0: #{tpu_custom_call.1}
  #allocation0 [shape = 'u32[]', space=smem, size = 0x4, offset = 0x4, fixed_abs, tag = 'smem constant byte address 0x4 - core index']
  #allocation1 [shape = 'u32[144,128]{1,0:T(1,128)}', space=vmem, size = 0x12000, scoped, tag = 'internal scratch']
  %s0 = inlined_call_operand.hbm [shape: f32[8,32], index: 0, kind: input, shape index: {}]
  %s1 = inlined_call_operand.hbm [shape: f32[8,32], index: 1, kind: input, shape index: {}]
  %s2 = inlined_call_operand.hbm [shape: f32[8,32], index: 2, kind: input, shape index: {}]
  %s3 = inlined_call_operand.hbm [shape: f32[8,32], index: 3, kind: input, shape index: {}]
  %s4 = inlined_call_operand.hbm [shape: f32[8,32], index: 4, kind: input, shape index: {}]
  %s5 = inlined_call_operand.vmem [shape: f32[8,32], index: 5, kind: input, shape index: {}]
  %s6 = inlined_call_operand.hbm [shape: f32[8,32], index: 6, kind: input, shape index: {}]
  %s7 = inlined_call_operand.hbm [shape: f32[8,32], index: 7, kind: input, shape index: {}]
  %s8 = inlined_call_operand.hbm [shape: f32[8,32], index: 8, kind: input, shape index: {}]
  %s9 = inlined_call_operand.vmem [shape: f32[8,32], index: 9, kind: input, shape index: {}]
  %s10 = inlined_call_operand.hbm [shape: f32[8,32], index: 10, kind: input, shape index: {}]
  %s11 = inlined_call_operand.hbm [shape: f32[8,32], index: 11, kind: input, shape index: {}]
  %s12 = inlined_call_operand.hbm [shape: f32[1,8,128], index: 12, kind: output, shape index: {}]
  %s13 = sld [smem:[#allocation0]]
  $region98: #{tpu_custom_call.1} parent=0
    _
  %s15 = ssub.s32 1, %s13
  %s16 = scalar_select 0, %s15, %s13
  $region1: #{tpu_custom_call.1} parent=0
    #allocation2 [shape = 'u8[4096]{0}', space=vmem, size = 0x1000, scoped, tag = 'input window, operand 0, single buffered']
    #allocation3 [shape = 's32[1]{0}', space=sflag, size = 0x4, scoped, tag = 'scoped memory for tpu_custom_call.1']
    #allocation4 [shape = 's32[1]{0}', space=sflag, size = 0x4, scoped, tag = 'scoped memory for tpu_custom_call.1']
    #allocation5 [shape = 'u8[4096]{0}', space=vmem, size = 0x1000, scoped, tag = 'input window, operand 1, single buffered']
    #allocation6 [shape = 's32[1]{0}', space=sflag, size = 0x4, scoped, tag = 'scoped memory for tpu_custom_call.1']
    #allocation7 [shape = 'u8[4096]{0}', space=vmem, size = 0x1000, scoped, tag = 'input window, operand 2, single buffered']
    #allocation8 [shape = 'u8[4096]{0}', space=vmem, size = 0x1000, scoped, tag = 'input window, operand 3, single buffered']
    #allocation9 [shape = 's32[1]{0}', space=sflag, size = 0x4, scoped, tag = 'scoped memory for tpu_custom_call.1']
    #allocation10 [shape = 'u8[4096]{0}', space=vmem, size = 0x1000, scoped, tag = 'input window, operand 4, single buffered']
    #allocation11 [shape = 'u8[4096]{0}', space=vmem, size = 0x1000, scoped, tag = 'input window, operand 6, single buffered']
    #allocation12 [shape = 's32[1]{0}', space=sflag, size = 0x4, scoped, tag = 'scoped memory for tpu_custom_call.1']
    #allocation13 [shape = 'u8[4096]{0}', space=vmem, size = 0x1000, scoped, tag = 'input window, operand 7, single buffered']
    #allocation14 [shape = 'u8[4096]{0}', space=vmem, size = 0x1000, scoped, tag = 'input window, operand 8, single buffered']
    #allocation15 [shape = 's32[1]{0}', space=sflag, size = 0x4, scoped, tag = 'scoped memory for tpu_custom_call.1']
    #allocation16 [shape = 'u8[4096]{0}', space=vmem, size = 0x1000, scoped, tag = 'input window, operand 10, single buffered']
    #allocation17 [shape = 'u8[4096]{0}', space=vmem, size = 0x1000, scoped, tag = 'input window, operand 11, single buffered']
    #allocation18 [shape = 's32[1]{0}', space=sflag, size = 0x4, scoped, tag = 'scoped memory for tpu_custom_call.1']
    #allocation19 [shape = 'u8[4096]{0}', space=vmem, size = 0x1000, scoped, tag = 'output window, operand 0, single buffered']
    %17 = vsyncpa [#allocation3], 0
    %18 = vsyncpa [#allocation6], 0
    %19 = vsyncpa [#allocation9], 0
    %20 = vsyncpa [#allocation12], 0
    %21 = vsyncpa [#allocation15], 0
    %22 = vsyncpa [#allocation18], 0
    %23 = vsyncpa [#allocation4], 0
    // Predicated region
    $region2: #{tpu_custom_call.1} parent=1 // pred_check
      _
    $region3: #{tpu_custom_call.1} parent=1 // pred_check_branch
      %25 = sbr.rel (0) target = $region5
    $region4: #{tpu_custom_call.1} parent=1 // pred_region
      %s27 = ssub.s32 128, 128
      %28 = vsyncadd [#allocation3], %s27
      %s30 = sshll.u32 [#allocation2], 4
      %s31 = int_to_ptr.vmem [resolvable:$true] %s30
      %33 = dma.hbm_to_vmem [thread:$0]  %s0, 128, %s31, [#allocation3]
    $region5: #{tpu_custom_call.1} parent=1 // pred_fallthru
      _
    // Predicated region
    $region6: #{tpu_custom_call.1} parent=1 // pred_check
      _
    $region7: #{tpu_custom_call.1} parent=1 // pred_check_branch
      %35 = sbr.rel (0) target = $region9
    $region8: #{tpu_custom_call.1} parent=1 // pred_region
      %s37 = ssub.s32 128, 128
      %38 = vsyncadd [#allocation6], %s37
      %s40 = sshll.u32 [#allocation5], 4
      %s41 = int_to_ptr.vmem [resolvable:$true] %s40
      %43 = dma.hbm_to_vmem [thread:$0]  %s1, 128, %s41, [#allocation6]
    $region9: #{tpu_custom_call.1} parent=1 // pred_fallthru
      _
    // Predicated region
    $region10: #{tpu_custom_call.1} parent=1 // pred_check
      _
    $region11: #{tpu_custom_call.1} parent=1 // pred_check_branch
      %45 = sbr.rel (0) target = $region13
    $region12: #{tpu_custom_call.1} parent=1 // pred_region
      %s47 = ssub.s32 128, 128
      %48 = vsyncadd [#allocation6], %s47
      %s50 = sshll.u32 [#allocation7], 4
      %s51 = int_to_ptr.vmem [resolvable:$true] %s50
      %53 = dma.hbm_to_vmem [thread:$0]  %s2, 128, %s51, [#allocation6]
    $region13: #{tpu_custom_call.1} parent=1 // pred_fallthru
      _
    // Predicated region
    $region14: #{tpu_custom_call.1} parent=1 // pred_check
      _
    $region15: #{tpu_custom_call.1} parent=1 // pred_check_branch
      %55 = sbr.rel (0) target = $region17
    $region16: #{tpu_custom_call.1} parent=1 // pred_region
      %s57 = ssub.s32 128, 128
      %58 = vsyncadd [#allocation9], %s57
      %s60 = sshll.u32 [#allocation8], 4
      %s61 = int_to_ptr.vmem [resolvable:$true] %s60
      %63 = dma.hbm_to_vmem [thread:$0]  %s3, 128, %s61, [#allocation9]
    $region17: #{tpu_custom_call.1} parent=1 // pred_fallthru
      _
    // Predicated region
    $region18: #{tpu_custom_call.1} parent=1 // pred_check
      _
    $region19: #{tpu_custom_call.1} parent=1 // pred_check_branch
      %65 = sbr.rel (0) target = $region21
    $region20: #{tpu_custom_call.1} parent=1 // pred_region
      %s67 = ssub.s32 128, 128
      %68 = vsyncadd [#allocation9], %s67
      %s70 = sshll.u32 [#allocation10], 4
      %s71 = int_to_ptr.vmem [resolvable:$true] %s70
      %73 = dma.hbm_to_vmem [thread:$0]  %s4, 128, %s71, [#allocation9]
    $region21: #{tpu_custom_call.1} parent=1 // pred_fallthru
      _
    // Predicated region
    $region22: #{tpu_custom_call.1} parent=1 // pred_check
      _
    $region23: #{tpu_custom_call.1} parent=1 // pred_check_branch
      %75 = sbr.rel (0) target = $region25
    $region24: #{tpu_custom_call.1} parent=1 // pred_region
      _
    $region25: #{tpu_custom_call.1} parent=1 // pred_fallthru
      _
    // Predicated region
    $region26: #{tpu_custom_call.1} parent=1 // pred_check
      _
    $region27: #{tpu_custom_call.1} parent=1 // pred_check_branch
      %77 = sbr.rel (0) target = $region29
    $region28: #{tpu_custom_call.1} parent=1 // pred_region
      %s79 = ssub.s32 128, 128
      %80 = vsyncadd [#allocation12], %s79
      %s82 = sshll.u32 [#allocation11], 4
      %s83 = int_to_ptr.vmem [resolvable:$true] %s82
      %85 = dma.hbm_to_vmem [thread:$0]  %s6, 128, %s83, [#allocation12]
    $region29: #{tpu_custom_call.1} parent=1 // pred_fallthru
      _
    // Predicated region
    $region30: #{tpu_custom_call.1} parent=1 // pred_check
      _
    $region31: #{tpu_custom_call.1} parent=1 // pred_check_branch
      %87 = sbr.rel (0) target = $region33
    $region32: #{tpu_custom_call.1} parent=1 // pred_region
      %s89 = ssub.s32 128, 128
      %90 = vsyncadd [#allocation12], %s89
      %s92 = sshll.u32 [#allocation13], 4
      %s93 = int_to_ptr.vmem [resolvable:$true] %s92
      %95 = dma.hbm_to_vmem [thread:$0]  %s7, 128, %s93, [#allocation12]
    $region33: #{tpu_custom_call.1} parent=1 // pred_fallthru
      _
    // Predicated region
    $region34: #{tpu_custom_call.1} parent=1 // pred_check
      _
    $region35: #{tpu_custom_call.1} parent=1 // pred_check_branch
      %97 = sbr.rel (0) target = $region37
    $region36: #{tpu_custom_call.1} parent=1 // pred_region
      %s99 = ssub.s32 128, 128
      %100 = vsyncadd [#allocation15], %s99
      %s102 = sshll.u32 [#allocation14], 4
      %s103 = int_to_ptr.vmem [resolvable:$true] %s102
      %105 = dma.hbm_to_vmem [thread:$0]  %s8, 128, %s103, [#allocation15]
    $region37: #{tpu_custom_call.1} parent=1 // pred_fallthru
      _
    // Predicated region
    $region38: #{tpu_custom_call.1} parent=1 // pred_check
      _
    $region39: #{tpu_custom_call.1} parent=1 // pred_check_branch
      %107 = sbr.rel (0) target = $region41
    $region40: #{tpu_custom_call.1} parent=1 // pred_region
      _
    $region41: #{tpu_custom_call.1} parent=1 // pred_fallthru
      _
    // Predicated region
    $region42: #{tpu_custom_call.1} parent=1 // pred_check
      _
    $region43: #{tpu_custom_call.1} parent=1 // pred_check_branch
      %109 = sbr.rel (0) target = $region45
    $region44: #{tpu_custom_call.1} parent=1 // pred_region
      %s111 = ssub.s32 128, 128
      %112 = vsyncadd [#allocation15], %s111
      %s114 = sshll.u32 [#allocation16], 4
      %s115 = int_to_ptr.vmem [resolvable:$true] %s114
      %117 = dma.hbm_to_vmem [thread:$0]  %s10, 128, %s115, [#allocation15]
    $region45: #{tpu_custom_call.1} parent=1 // pred_fallthru
      _
    // Predicated region
    $region46: #{tpu_custom_call.1} parent=1 // pred_check
      _
    $region47: #{tpu_custom_call.1} parent=1 // pred_check_branch
      %119 = sbr.rel (0) target = $region49
    $region48: #{tpu_custom_call.1} parent=1 // pred_region
      %s121 = ssub.s32 128, 128
      %122 = vsyncadd [#allocation18], %s121
      %s124 = sshll.u32 [#allocation17], 4
      %s125 = int_to_ptr.vmem [resolvable:$true] %s124
      %127 = dma.hbm_to_vmem [thread:$0]  %s11, 128, %s125, [#allocation18]
    $region49: #{tpu_custom_call.1} parent=1 // pred_fallthru
      _
    // Predicated region
    $region50: #{tpu_custom_call.1} parent=1 // pred_check
      _
    $region51: #{tpu_custom_call.1} parent=1 // pred_check_branch
      %129 = sbr.rel (0) target = $region53
    $region52: #{tpu_custom_call.1} parent=1 // pred_region
      %130 = dma.done [#allocation3], 128
    $region53: #{tpu_custom_call.1} parent=1 // pred_fallthru
      _
    // Predicated region
    $region54: #{tpu_custom_call.1} parent=1 // pred_check
      _
    $region55: #{tpu_custom_call.1} parent=1 // pred_check_branch
      %132 = sbr.rel (0) target = $region57
    $region56: #{tpu_custom_call.1} parent=1 // pred_region
      %133 = dma.done [#allocation6], 128
    $region57: #{tpu_custom_call.1} parent=1 // pred_fallthru
      _
    // Predicated region
    $region58: #{tpu_custom_call.1} parent=1 // pred_check
      _
    $region59: #{tpu_custom_call.1} parent=1 // pred_check_branch
      %135 = sbr.rel (0) target = $region61
    $region60: #{tpu_custom_call.1} parent=1 // pred_region
      %136 = dma.done [#allocation6], 128
    $region61: #{tpu_custom_call.1} parent=1 // pred_fallthru
      _
    // Predicated region
    $region62: #{tpu_custom_call.1} parent=1 // pred_check
      _
    $region63: #{tpu_custom_call.1} parent=1 // pred_check_branch
      %138 = sbr.rel (0) target = $region65
    $region64: #{tpu_custom_call.1} parent=1 // pred_region
      %139 = dma.done [#allocation9], 128
    $region65: #{tpu_custom_call.1} parent=1 // pred_fallthru
      _
    // Predicated region
    $region66: #{tpu_custom_call.1} parent=1 // pred_check
      _
    $region67: #{tpu_custom_call.1} parent=1 // pred_check_branch
      %141 = sbr.rel (0) target = $region69
    $region68: #{tpu_custom_call.1} parent=1 // pred_region
      %142 = dma.done [#allocation9], 128
    $region69: #{tpu_custom_call.1} parent=1 // pred_fallthru
      _
    // Predicated region
    $region70: #{tpu_custom_call.1} parent=1 // pred_check
      _
    $region71: #{tpu_custom_call.1} parent=1 // pred_check_branch
      %144 = sbr.rel (0) target = $region73
    $region72: #{tpu_custom_call.1} parent=1 // pred_region
      %145 = dma.done [#allocation12], 128
    $region73: #{tpu_custom_call.1} parent=1 // pred_fallthru
      _
    // Predicated region
    $region74: #{tpu_custom_call.1} parent=1 // pred_check
      _
    $region75: #{tpu_custom_call.1} parent=1 // pred_check_branch
      %147 = sbr.rel (0) target = $region77
    $region76: #{tpu_custom_call.1} parent=1 // pred_region
      %148 = dma.done [#allocation12], 128
    $region77: #{tpu_custom_call.1} parent=1 // pred_fallthru
      _
    // Predicated region
    $region78: #{tpu_custom_call.1} parent=1 // pred_check
      _
    $region79: #{tpu_custom_call.1} parent=1 // pred_check_branch
      %150 = sbr.rel (0) target = $region81
    $region80: #{tpu_custom_call.1} parent=1 // pred_region
      %151 = dma.done [#allocation15], 128
    $region81: #{tpu_custom_call.1} parent=1 // pred_fallthru
      _
    // Predicated region
    $region82: #{tpu_custom_call.1} parent=1 // pred_check
      _
    $region83: #{tpu_custom_call.1} parent=1 // pred_check_branch
      %153 = sbr.rel (0) target = $region85
    $region84: #{tpu_custom_call.1} parent=1 // pred_region
      %154 = dma.done [#allocation15], 128
    $region85: #{tpu_custom_call.1} parent=1 // pred_fallthru
      _
    // Predicated region
    $region86: #{tpu_custom_call.1} parent=1 // pred_check
      _
    $region87: #{tpu_custom_call.1} parent=1 // pred_check_branch
      %156 = sbr.rel (0) target = $region89
    $region88: #{tpu_custom_call.1} parent=1 // pred_region
      %157 = dma.done [#allocation18], 128
    $region89: #{tpu_custom_call.1} parent=1 // pred_fallthru
      _
    %v158 = vld [vmem:[#allocation2] sm:$0xff]
    %v159 = vld [vmem:[#allocation5] sm:$0xff]
    %v160 = vmul.f32 %v158, %v158
    %vm161 = vcmask 261120
    %v162 = vsel %vm161, %v160, 0.0
    %163 = vadd.xlane.f32.xlu0 %v162
    %v164 = vpop.xlane.xlu0 %163
    %v165 = vmax.f32 %v164, 1e-16
    %v166 = vrsqrt.pop %v165
    %v167 = vmul.f32 %v159, %v159
    %v168 = vsel %vm161, %v167, 0.0
    %169 = vadd.xlane.f32.xlu0 %v168
    %v170 = vpop.xlane.xlu0 %169
    %v171 = vmax.f32 %v170, 1e-16
    %v172 = vrsqrt.pop %v171
    %v173 = vmul.f32 %v158, %v159
    %v174 = vsel %vm161, %v173, 0.0
    %175 = vadd.xlane.f32.xlu0 %v174
    %v176 = vpop.xlane.xlu0 %175
    %v177 = vmul.f32 %v176, 0.083333336
    %v178 = vmul.f32 %v166, %v172
    %v179 = vmul.f32 %v177, %v178
    %v180 = vld [vmem:[#allocation7] sm:$0xff]
    %v181 = vmul.f32 %v180, %v180
    %v182 = vsel %vm161, %v181, 0.0
    %183 = vadd.xlane.f32.xlu0 %v182
    %v184 = vpop.xlane.xlu0 %183
    %v185 = vmax.f32 %v184, 1e-16
    %v186 = vrsqrt.pop %v185
    %v187 = vmul.f32 %v158, %v180
    %v188 = vsel %vm161, %v187, 0.0
    %189 = vadd.xlane.f32.xlu0 %v188
    %v190 = vpop.xlane.xlu0 %189
    %v191 = vmul.f32 %v190, 0.083333336
    %v192 = vmul.f32 %v166, %v186
    %v193 = vmul.f32 %v191, %v192
    %v194 = vadd.f32 %v179, %v193
    %v195 = vld [vmem:[#allocation8] sm:$0xff]
    %v196 = vld [vmem:[#allocation10] sm:$0xff]
    %v197 = vmul.f32 %v195, %v195
    %v198 = vsel %vm161, %v197, 0.0
    %199 = vadd.xlane.f32.xlu0 %v198
    %v200 = vpop.xlane.xlu0 %199
    %v201 = vmax.f32 %v200, 1e-16
    %v202 = vrsqrt.pop %v201
    %v203 = vmul.f32 %v196, %v196
    %v204 = vsel %vm161, %v203, 0.0
    %205 = vadd.xlane.f32.xlu0 %v204
    %v206 = vpop.xlane.xlu0 %205
    %v207 = vmax.f32 %v206, 1e-16
    %v208 = vrsqrt.pop %v207
    %v209 = vmul.f32 %v195, %v196
    %v210 = vsel %vm161, %v209, 0.0
    %211 = vadd.xlane.f32.xlu0 %v210
    %v212 = vpop.xlane.xlu0 %211
    %v213 = vmul.f32 %v212, 0.083333336
    %v214 = vmul.f32 %v202, %v208
    %v215 = vmul.f32 %v213, %v214
    %v216 = vadd.f32 %v194, %v215
    %v217 = vmul.f32 %v195, %v180
    %v218 = vsel %vm161, %v217, 0.0
    %219 = vadd.xlane.f32.xlu0 %v218
    %v220 = vpop.xlane.xlu0 %219
    %v221 = vmul.f32 %v220, 0.083333336
    %v222 = vmul.f32 %v202, %v186
    %v223 = vmul.f32 %v221, %v222
    %v224 = vadd.f32 %v216, %v223
    %v225 = vld [vmem:[%s5] sm:$0xff]
    %v226 = vld [vmem:[#allocation11] sm:$0xff]
    %v227 = vmul.f32 %v225, %v225
    %v228 = vsel %vm161, %v227, 0.0
    %229 = vadd.xlane.f32.xlu0 %v228
    %v230 = vpop.xlane.xlu0 %229
    %v231 = vmax.f32 %v230, 1e-16
    %v232 = vrsqrt.pop %v231
    %v233 = vmul.f32 %v226, %v226
    %v234 = vsel %vm161, %v233, 0.0
    %235 = vadd.xlane.f32.xlu0 %v234
    %v236 = vpop.xlane.xlu0 %235
    %v237 = vmax.f32 %v236, 1e-16
    %v238 = vrsqrt.pop %v237
    %v239 = vmul.f32 %v225, %v226
    %v240 = vsel %vm161, %v239, 0.0
    %241 = vadd.xlane.f32.xlu0 %v240
    %v242 = vpop.xlane.xlu0 %241
    %v243 = vmul.f32 %v242, 0.083333336
    %v244 = vmul.f32 %v232, %v238
    %v245 = vmul.f32 %v243, %v244
    %v246 = vadd.f32 %v224, %v245
    %v247 = vld [vmem:[#allocation13] sm:$0xff]
    %v248 = vmul.f32 %v247, %v247
    %v249 = vsel %vm161, %v248, 0.0
    %250 = vadd.xlane.f32.xlu0 %v249
    %v251 = vpop.xlane.xlu0 %250
    %v252 = vmax.f32 %v251, 1e-16
    %v253 = vrsqrt.pop %v252
    %v254 = vmul.f32 %v225, %v247
    %v255 = vsel %vm161, %v254, 0.0
    %256 = vadd.xlane.f32.xlu0 %v255
    %v257 = vpop.xlane.xlu0 %256
    %v258 = vmul.f32 %v257, 0.083333336
    %v259 = vmul.f32 %v232, %v253
    %v260 = vmul.f32 %v258, %v259
    %v261 = vadd.f32 %v246, %v260
    %v262 = vld [vmem:[#allocation14] sm:$0xff]
    %v263 = vld [vmem:[%s9] sm:$0xff]
    %v264 = vmul.f32 %v262, %v262
    %v265 = vsel %vm161, %v264, 0.0
    %266 = vadd.xlane.f32.xlu0 %v265
    %v267 = vpop.xlane.xlu0 %266
    %v268 = vmax.f32 %v267, 1e-16
    %v269 = vrsqrt.pop %v268
    %v270 = vmul.f32 %v263, %v263
    %v271 = vsel %vm161, %v270, 0.0
    %272 = vadd.xlane.f32.xlu0 %v271
    %v273 = vpop.xlane.xlu0 %272
    %v274 = vmax.f32 %v273, 1e-16
    %v275 = vrsqrt.pop %v274
    %v276 = vmul.f32 %v262, %v263
    %v277 = vsel %vm161, %v276, 0.0
    %278 = vadd.xlane.f32.xlu0 %v277
    %v279 = vpop.xlane.xlu0 %278
    %v280 = vmul.f32 %v279, 0.083333336
    %v281 = vmul.f32 %v269, %v275
    %v282 = vmul.f32 %v280, %v281
    %v283 = vadd.f32 %v261, %v282
    %v284 = vmul.f32 %v262, %v247
    %v285 = vsel %vm161, %v284, 0.0
    %286 = vadd.xlane.f32.xlu0 %v285
    %v287 = vpop.xlane.xlu0 %286
    %v288 = vmul.f32 %v287, 0.083333336
    %v289 = vmul.f32 %v269, %v253
    %v290 = vmul.f32 %v288, %v289
    %v291 = vadd.f32 %v283, %v290
    %v292 = vld [vmem:[#allocation16] sm:$0xff]
    %v293 = vmul.f32 %v292, %v292
    %v294 = vsel %vm161, %v293, 0.0
    %295 = vadd.xlane.f32.xlu0 %v294
    %v296 = vpop.xlane.xlu0 %295
    %v297 = vmax.f32 %v296, 1e-16
    %v298 = vrsqrt.pop %v297
    %v299 = vmul.f32 %v292, %v263
    %v300 = vsel %vm161, %v299, 0.0
    %301 = vadd.xlane.f32.xlu0 %v300
    %v302 = vpop.xlane.xlu0 %301
    %v303 = vmul.f32 %v302, 0.083333336
    %v304 = vmul.f32 %v298, %v275
    %v305 = vmul.f32 %v303, %v304
    %v306 = vadd.f32 %v291, %v305
    %v307 = vmul.f32 %v292, %v226
    %v308 = vsel %vm161, %v307, 0.0
    %309 = vadd.xlane.f32.xlu0 %v308
    %v310 = vpop.xlane.xlu0 %309
    %v311 = vmul.f32 %v310, 0.083333336
    %v312 = vmul.f32 %v298, %v238
    %v313 = vmul.f32 %v311, %v312
    %v314 = vadd.f32 %v306, %v313
    %v315 = vld [vmem:[#allocation17] sm:$0xff]
    %v316 = vmul.f32 %v315, %v315
    %v317 = vsel %vm161, %v316, 0.0
    %318 = vadd.xlane.f32.xlu0 %v317
    %v319 = vpop.xlane.xlu0 %318
    %v320 = vmax.f32 %v319, 1e-16
    %v321 = vrsqrt.pop %v320
    %v322 = vmul.f32 %v315, %v196
    %v323 = vsel %vm161, %v322, 0.0
    %324 = vadd.xlane.f32.xlu0 %v323
    %v325 = vpop.xlane.xlu0 %324
    %v326 = vmul.f32 %v325, 0.083333336
    %v327 = vmul.f32 %v321, %v208
    %v328 = vmul.f32 %v326, %v327
    %v329 = vadd.f32 %v314, %v328
    %v330 = vmul.f32 %v315, %v159
    %v331 = vsel %vm161, %v330, 0.0
    %332 = vadd.xlane.f32.xlu0 %v331
    %v333 = vpop.xlane.xlu0 %332
    %v334 = vmul.f32 %v333, 0.083333336
    %v335 = vmul.f32 %v321, %v172
    %v336 = vmul.f32 %v334, %v335
    %v337 = vadd.f32 %v329, %v336
    %vm338 = vcmask 7168
    %v339 = vsel %vm338, %v337, 0.0
    %340 = vadd.xlane.f32.xlu0 %v339
    %v341 = vpop.xlane.xlu0 %340
    %v342 = vrot.slane %v341, 4
    %v343 = vadd.f32 %v341, %v342
    %v344 = vrot.slane %v343, 2
    %v345 = vadd.f32 %v343, %v344
    %v346 = vrot.slane %v345, 1
    %v347 = vadd.f32 %v345, %v346
    %s348 = vtos %v347
    %v349 = vstv %s348
    %350 = vst [vmem:[#allocation19] sm:$0xff] %v349
    // Predicated region
    $region90: #{tpu_custom_call.1} parent=1 // pred_check
      _
    $region91: #{tpu_custom_call.1} parent=1 // pred_check_branch
      %352 = sbr.rel (0) target = $region93
    $region92: #{tpu_custom_call.1} parent=1 // pred_region
      %s354 = ssub.s32 128, 128
      %355 = vsyncadd [#allocation4], %s354
      %s357 = sshll.u32 [#allocation19], 4
      %s358 = int_to_ptr.vmem [resolvable:$true] %s357
      %360 = dma.vmem_to_hbm [thread:$0]  %s358, 128, %s12, [#allocation4]
    $region93: #{tpu_custom_call.1} parent=1 // pred_fallthru
      _
    // Predicated region
    $region94: #{tpu_custom_call.1} parent=1 // pred_check
      _
    $region95: #{tpu_custom_call.1} parent=1 // pred_check_branch
      %362 = sbr.rel (0) target = $region97
    $region96: #{tpu_custom_call.1} parent=1 // pred_region
      %363 = dma.done [#allocation4], 128
    $region97: #{tpu_custom_call.1} parent=1 // pred_fallthru
      _
    %364 = vsyncpa [#allocation3], 1
    %365 = vsyncpa [#allocation6], 1
    %366 = vsyncpa [#allocation9], 1
    %367 = vsyncpa [#allocation12], 1
    %368 = vsyncpa [#allocation15], 1
    %369 = vsyncpa [#allocation18], 1
    %370 = vsyncpa [#allocation4], 1

</llo_original>
